<compile_context>
chip_gen: v5e
topology: v5e:2x2
jax: 0.10.0
libtpu: 0.0.40
codegen_flags: <defaults>
</compile_context>

<pallas_src>
import functools
import math

import jax
import jax.numpy as jnp
from jax.experimental import pallas as pl
from jax.experimental.pallas import tpu as pltpu

LANE = 128
MAX_BLOCK_ROWS = 2048   # 2048 x 128 f32 = 1 MiB per input tile
NUM_SPLITS = 2          # leading "parallel" grid axis (2 TCs on v7x)


def _logcosh_kernel(x_ref, y_ref, o_ref, acc_ref, *,
                    n, block_rows, blocks_per_split):
    c = pl.program_id(0)   # core-split index (parallel)
    i = pl.program_id(1)   # row-chunk index within the split (arbitrary)

    @pl.when(i == 0)
    def _():
        acc_ref[...] = jnp.zeros_like(acc_ref)

    # Global element index of every position in this (unclamped) block; used
    # to mask the tail and any duplicated/clamped trailing blocks.
    blk = c * blocks_per_split + i
    base = blk * (block_rows * LANE)
    row_ids = jax.lax.broadcasted_iota(jnp.int32, (block_rows, LANE), 0)
    lane_ids = jax.lax.broadcasted_iota(jnp.int32, (block_rows, LANE), 1)
    mask = (base + row_ids * LANE + lane_ids) < n

    x = x_ref[...].astype(jnp.float32)
    y = y_ref[...].astype(jnp.float32)
    diff = y - x
    # numerically stable softplus(z) = max(z, 0) + log1p(exp(-|z|))
    z = -2.0 * diff
    sp = jnp.maximum(z, 0.0) + jnp.log1p(jnp.exp(-jnp.abs(z)))
    val = diff + sp - math.log(2.0)

    # Pure VPU accumulation; OOB / tail garbage is select-ed away (no NaN leak).
    acc_ref[...] += jnp.where(mask, val, 0.0)

    @pl.when(i == pl.num_programs(1) - 1)
    def _():
        # Single cross-lane/sublane reduction per split.
        o_ref[...] = jnp.sum(acc_ref[...]).reshape(1, 1, 1)


def logcosh_loss(x, y):
    assert x.shape == y.shape, "x and y must have the same shape"
    n = x.size

    xf = x.reshape(-1)
    yf = y.reshape(-1)

    # Only a tiny (<128 element) pad when n is not a lane multiple, so the 2-D
    # reshape is legal; padded positions are masked in-kernel.
    rem = n % LANE
    if rem:
        pad = LANE - rem
        xf = jnp.pad(xf, (0, pad))
        yf = jnp.pad(yf, (0, pad))

    rows = xf.size // LANE
    x2 = xf.reshape(rows, LANE)
    y2 = yf.reshape(rows, LANE)

    # Large blocks (up to 1 MiB f32 / 0.5 MiB bf16 per input tile).  Multiple
    # of 16 sublanes so bf16 inputs are also legal.
    block_rows = min(MAX_BLOCK_ROWS, ((rows + 15) // 16) * 16)
    total_blocks = pl.cdiv(rows, block_rows)
    blocks_per_split = pl.cdiv(total_blocks, NUM_SPLITS)

    kern = functools.partial(
        _logcosh_kernel, n=n, block_rows=block_rows,
        blocks_per_split=blocks_per_split)

    def in_map(c, i):
        # Clamp so the DMA never targets a fully out-of-range block; the
        # kernel's global-index mask zeroes any duplicated contribution.
        blk = jnp.minimum(c * blocks_per_split + i, total_blocks - 1)
        return (blk, 0)

    partials = pl.pallas_call(
        kern,
        out_shape=jax.ShapeDtypeStruct((NUM_SPLITS, 1, 1), jnp.float32),
        grid_spec=pltpu.PrefetchScalarGridSpec(
            num_scalar_prefetch=0,
            grid=(NUM_SPLITS, blocks_per_split),
            in_specs=[
                pl.BlockSpec((block_rows, LANE), in_map),
                pl.BlockSpec((block_rows, LANE), in_map),
            ],
            out_specs=pl.BlockSpec((1, 1, 1), lambda c, i: (c, 0, 0)),
            scratch_shapes=[pltpu.VMEM((block_rows, LANE), jnp.float32)],
        ),
        compiler_params=pltpu.CompilerParams(
            dimension_semantics=("parallel", "arbitrary"),
        ),
    )(x2, y2)

    return jnp.sum(partials) * (1.0 / float(n))


def _logcosh_ref(x, y):
    diff = (y - x).astype(jnp.float32)
    sp = jnp.logaddexp(0.0, -2.0 * diff)
    return jnp.mean(diff + sp - math.log(2.0))


if __name__ == "__main__":
    key = jax.random.PRNGKey(0)
    kx, ky = jax.random.split(key)

    # NCHW-like prediction / target pair (layout is irrelevant: full mean).
    x = jax.random.normal(kx, (2, 4, 16, 16), dtype=jnp.float32)
    y = jax.random.normal(ky, (2, 4, 16, 16), dtype=jnp.float32)

    loss = logcosh_loss(x, y)
    jax.block_until_ready(loss)
    ref = _logcosh_ref(x, y)
    assert jnp.allclose(loss, ref, rtol=1e-5, atol=1e-5), (loss, ref)

    # Also exercise the non-lane-multiple tail-masking path.
    k2x, k2y = jax.random.split(jax.random.PRNGKey(1))
    x2 = jax.random.normal(k2x, (3, 5, 7, 11), dtype=jnp.float32)
    y2 = jax.random.normal(k2y, (3, 5, 7, 11), dtype=jnp.float32)
    loss2 = logcosh_loss(x2, y2)
    jax.block_until_ready(loss2)
    ref2 = _logcosh_ref(x2, y2)
    assert jnp.allclose(loss2, ref2, rtol=1e-5, atol=1e-5), (loss2, ref2)

    print("KERNEL_OK")
</pallas_src>

<mosaic_0001>
module attributes {stable_mosaic.version = 11 : i64} {
  func.func @_logcosh_kernel(%arg0: i32, %arg1: i32, %arg2: memref<16x128xf32, #tpu.memory_space<vmem>>, %arg3: memref<16x128xf32, #tpu.memory_space<vmem>>, %arg4: memref<1x1x1xf32, #tpu.memory_space<vmem>>, %arg5: memref<16x128xf32, #tpu.memory_space<vmem>>) attributes {dimension_semantics = [#tpu.dimension_semantics<parallel>, #tpu.dimension_semantics<arbitrary>], iteration_bounds = array<i64: 2, 1>, scalar_prefetch = 0 : i64, scratch_operands = 1 : i64, tpu.core_type = #tpu.core_type<tc>, window_params = [{transform_indices = @transform_0, window_bounds = array<i64: 16, 128>}, {transform_indices = @transform_1, window_bounds = array<i64: 16, 128>}, {transform_indices = @transform_2, window_bounds = array<i64: 1, 1, 1>}]} {
    %c0_i32 = arith.constant 0 : i32
    %0 = arith.cmpi eq, %arg1, %c0_i32 : i32
    %1 = arith.extui %0 : i1 to i32
    %c0_i32_0 = arith.constant 0 : i32
    %2 = arith.cmpi ne, %1, %c0_i32_0 : i32
    scf.if %2 {
      %cst_15 = arith.constant 0.000000e+00 : f32
      %39 = vector.broadcast %cst_15 : f32 to vector<16x128xf32>
      %c0_16 = arith.constant 0 : index
      %c0_17 = arith.constant 0 : index
      %40 = vector.load %arg5[%c0_16, %c0_17] : memref<16x128xf32, #tpu.memory_space<vmem>>, vector<16x128xf32>
      tpu.vector_store %arg5[%c0_16, %c0_17], %39 {strides = array<i32>} : memref<16x128xf32, #tpu.memory_space<vmem>>, vector<16x128xf32>,
    } else {
    }
    %c1_i32 = arith.constant 1 : i32
    %3 = arith.muli %arg0, %c1_i32 : i32
    %4 = arith.addi %3, %arg1 : i32
    %c2048_i32 = arith.constant 2048 : i32
    %5 = arith.muli %4, %c2048_i32 : i32
    %6 = tpu.iota {dimensions = array<i32: 0>} : vector<16x128xi32>
    %7 = tpu.iota {dimensions = array<i32: 1>} : vector<16x128xi32>
    %c128_i32 = arith.constant 128 : i32
    %8 = vector.broadcast %c128_i32 : i32 to vector<16x128xi32>
    %9 = arith.muli %6, %8 : vector<16x128xi32>
    %10 = vector.broadcast %5 : i32 to vector<16x128xi32>
    %11 = arith.addi %10, %9 : vector<16x128xi32>
    %12 = arith.addi %11, %7 : vector<16x128xi32>
    %c2048_i32_1 = arith.constant 2048 : i32
    %13 = vector.broadcast %c2048_i32_1 : i32 to vector<16x128xi32>
    %14 = arith.cmpi slt, %12, %13 : vector<16x128xi32>
    %c0 = arith.constant 0 : index
    %c0_2 = arith.constant 0 : index
    %15 = vector.load %arg2[%c0, %c0_2] : memref<16x128xf32, #tpu.memory_space<vmem>>, vector<16x128xf32>
    %c0_3 = arith.constant 0 : index
    %c0_4 = arith.constant 0 : index
    %16 = vector.load %arg3[%c0_3, %c0_4] : memref<16x128xf32, #tpu.memory_space<vmem>>, vector<16x128xf32>
    %17 = arith.subf %16, %15 : vector<16x128xf32>
    %cst = arith.constant -2.000000e+00 : f32
    %18 = vector.broadcast %cst : f32 to vector<16x128xf32>
    %19 = arith.mulf %18, %17 : vector<16x128xf32>
    %cst_5 = arith.constant 0.000000e+00 : f32
    %20 = vector.broadcast %cst_5 : f32 to vector<16x128xf32>
    %21 = arith.maximumf %19, %20 : vector<16x128xf32>
    %22 = math.absf %19 : vector<16x128xf32>
    %cst_6 = arith.constant 0.000000e+00 : f32
    %23 = vector.broadcast %cst_6 : f32 to vector<16x128xf32>
    %24 = arith.subf %23, %22 : vector<16x128xf32>
    %25 = math.exp %24 : vector<16x128xf32>
    %26 = math.log1p %25 : vector<16x128xf32>
    %27 = arith.addf %21, %26 : vector<16x128xf32>
    %28 = arith.addf %17, %27 : vector<16x128xf32>
    %cst_7 = arith.constant 0.693147182 : f32
    %29 = vector.broadcast %cst_7 : f32 to vector<16x128xf32>
    %30 = arith.subf %28, %29 : vector<16x128xf32>
    %c0_8 = arith.constant 0 : index
    %c0_9 = arith.constant 0 : index
    %31 = vector.load %arg5[%c0_8, %c0_9] : memref<16x128xf32, #tpu.memory_space<vmem>>, vector<16x128xf32>
    %cst_10 = arith.constant 0.000000e+00 : f32
    %32 = vector.broadcast %cst_10 : f32 to vector<16x128xf32>
    %33 = arith.select %14, %30, %32 : vector<16x128xi1>, vector<16x128xf32>
    %34 = arith.addf %31, %33 : vector<16x128xf32>
    %c0_11 = arith.constant 0 : index
    %c0_12 = arith.constant 0 : index
    %35 = vector.load %arg5[%c0_11, %c0_12] : memref<16x128xf32, #tpu.memory_space<vmem>>, vector<16x128xf32>
    tpu.vector_store %arg5[%c0_11, %c0_12], %34 {strides = array<i32>} : memref<16x128xf32, #tpu.memory_space<vmem>>, vector<16x128xf32>,
    %c0_i32_13 = arith.constant 0 : i32
    %36 = arith.cmpi eq, %arg1, %c0_i32_13 : i32
    %37 = arith.extui %36 : i1 to i32
    %c0_i32_14 = arith.constant 0 : i32
    %38 = arith.cmpi ne, %37, %c0_i32_14 : i32
    scf.if %38 {
      %c0_15 = arith.constant 0 : index
      %c0_16 = arith.constant 0 : index
      %39 = vector.load %arg5[%c0_15, %c0_16] : memref<16x128xf32, #tpu.memory_space<vmem>>, vector<16x128xf32>
      %40 = vector.shape_cast %39 : vector<16x128xf32> to vector<1x16x128xf32>
      %cst_17 = arith.constant dense<0.000000e+00> : vector<1xf32>
      %41 = vector.multi_reduction <add>, %40, %cst_17 [1, 2] : vector<1x16x128xf32> to vector<1xf32>
      %42 = vector.shape_cast %41 : vector<1xf32> to vector<1x1x1xf32>
      %43 = vector.extract %42[0, 0, 0] : f32 from vector<1x1x1xf32>
      %44 = vector.broadcast %43 : f32 to vector<1x1x1xf32>
      %c0_18 = arith.constant 0 : index
      %c0_19 = arith.constant 0 : index
      %c0_20 = arith.constant 0 : index
      %45 = vector.load %arg4[%c0_18, %c0_19, %c0_20] : memref<1x1x1xf32, #tpu.memory_space<vmem>>, vector<1x1x1xf32>
      tpu.vector_store %arg4[%c0_18, %c0_19, %c0_20], %44 {strides = array<i32>} : memref<1x1x1xf32, #tpu.memory_space<vmem>>, vector<1x1x1xf32>,
    } else {
    }
    return
  }
  func.func @transform_0(%arg0: i32, %arg1: i32) -> (i32, i32) {
    %c1_i32 = arith.constant 1 : i32
    %0 = arith.muli %arg0, %c1_i32 : i32
    %1 = arith.addi %0, %arg1 : i32
    %c0_i32 = arith.constant 0 : i32
    %2 = arith.minsi %1, %c0_i32 : i32
    %c0_i32_0 = arith.constant 0 : i32
    %c0_i32_1 = arith.constant 0 : i32
    return %2, %c0_i32_0 : i32, i32
  }
  func.func @transform_1(%arg0: i32, %arg1: i32) -> (i32, i32) {
    %c1_i32 = arith.constant 1 : i32
    %0 = arith.muli %arg0, %c1_i32 : i32
    %1 = arith.addi %0, %arg1 : i32
    %c0_i32 = arith.constant 0 : i32
    %2 = arith.minsi %1, %c0_i32 : i32
    %c0_i32_0 = arith.constant 0 : i32
    %c0_i32_1 = arith.constant 0 : i32
    return %2, %c0_i32_0 : i32, i32
  }
  func.func @transform_2(%arg0: i32, %arg1: i32) -> (i32, i32, i32) {
    %c0_i32 = arith.constant 0 : i32
    %c0_i32_0 = arith.constant 0 : i32
    %c0_i32_1 = arith.constant 0 : i32
    return %arg0, %c0_i32, %c0_i32_0 : i32, i32, i32
  }
}

</mosaic_0001>

<llo_original>
// kernel: tpu_custom_call.1
$region0: #{tpu_custom_call.1}
  #allocation0 [shape = 'u32[]', space=smem, size = 0x4, offset = 0x4, fixed_abs, tag = 'smem constant byte address 0x4 - core index']
  #allocation1 [shape = 'u32[72,128]{1,0:T(1,128)}', space=vmem, size = 0x9000, scoped, tag = 'internal scratch']
  #allocation2 [shape = 'f32[16,128]{1,0:T(8,128)}', space=vmem, size = 0x2000, scoped, tag = 'scratch operand']
  %s0 = inlined_call_operand.hbm [shape: f32[16,128], index: 0, kind: input, shape index: {}]
  %s1 = inlined_call_operand.hbm [shape: f32[16,128], index: 1, kind: input, shape index: {}]
  %s2 = inlined_call_operand.vmem [shape: f32[2,1,1], index: 2, kind: output, shape index: {}]
  %s3 = sld [smem:[#allocation0]]
  $region57: #{tpu_custom_call.1} parent=0
    _
  %s5 = ssub.s32 1, %s3
  %s6 = scalar_select 0, %s5, %s3
  $region1: #{tpu_custom_call.1} parent=0
    #allocation3 [shape = 'u8[16384]{0}', space=vmem, size = 0x4000, scoped, tag = 'input window, operand 0']
    #allocation4 [shape = 's32[2]{0}', space=sflag, size = 0x8, scoped, tag = 'scoped memory for tpu_custom_call.1']
    #allocation5 [shape = 'u8[16384]{0}', space=vmem, size = 0x4000, scoped, tag = 'input window, operand 1']
    #allocation6 [shape = 's32[2]{0}', space=sflag, size = 0x8, scoped, tag = 'scoped memory for tpu_custom_call.1']
    %7 = vsyncpa [#allocation4], 0
    %s8 = scalar_lea.sflag [#allocation4], 1
    %9 = vsyncpa %s8, 0
    %10 = vsyncpa [#allocation6], 0
    %s11 = scalar_lea.sflag [#allocation6], 1
    %12 = vsyncpa %s11, 0
    loop: start=0, step=1, limit=4
    $region2: #{tpu_custom_call.1} parent=1 // loop_pre_header
      _
    $region3: #{tpu_custom_call.1} parent=1 // loop_header
      %s14 = sphi 0, %s18
      %p15 = scmp.ge.s32.totalorder %s14, 4
      %s21 = sphi 0, %s33
      %s22 = sphi 0, %s29
      %s23 = sphi 0, %s21
      %s24 = sphi 0, %s22
      %s25 = sphi 0, %s23
      %s26 = sphi 0, %s24
      %s42 = sphi 0, %s44
      %s45 = sphi 0, %s42
      %s46 = sphi 0, %s45
      %s62 = sphi 0, %s46
      %s74 = sphi 0, %s76
      %s77 = sphi 0, %s74
      %s78 = sphi 0, %s77
      %s94 = sphi 0, %s78
      %s100 = sphi 0, %s102
      %s103 = sphi 0, %s100
      %s104 = sphi 0, %s103
      %s120 = sphi 0, %s104
    $region4: #{tpu_custom_call.1} parent=1 // loop_header_branch
      %17 = sbr.rel (%p15) target = $region8
    $region5: #{tpu_custom_call.1} parent=1 // loop_body
      %s19 = ssub.s32 %s14, 1
      %s20 = ssub.s32 %s14, 2
      %s27 = sadd.s32 1, %s22
      %p28 = scmp.ge.s32.totalorder %s27, 1
      %s29 = scalar_select %p28, 0, %s27
      %s30 = sadd.s32 1, %s21
      %s31 = scalar_select %p28, %s30, %s21
      %p32 = scmp.ge.s32.totalorder %s31, 2
      %s33 = scalar_select %p32, 0, %s31
      %s34 = sadd.s32 %s21, %s22
      %p35 = scmp.lt.s32.totalorder %s34, 0
      %s36 = scalar_select %p35, %s34, 0
      %s37 = sadd.s32 %s33, %s29
      %p38 = scmp.lt.s32.totalorder %s37, 0
      %s39 = scalar_select %p38, %s37, 0
      %s40 = ssub.s32 %s36, %s39
      %p41 = scmp.eq.s32.totalorder %s40, 0
      %s43 = sadd.s32 %s42, 1
      %s44 = scalar_select %p41, %s42, %s43
      %p47 = pneg %p41
      %p48 = scmp.eq.s32.totalorder %s14, 1
      %p49 = por %p47, %p48
      %p50 = scmp.ne.s32.totalorder %s42, %s45
      %p51 = scmp.eq.s32.totalorder %s14, 0
      %p52 = por %p50, %p51
      %p53 = scmp.ne.s32.totalorder %s42, %s45
      %p54 = scmp.eq.s32.totalorder %s19, 1
      %p55 = por %p53, %p54
      %p56 = scmp.ne.s32.totalorder %s45, %s46
      %p57 = scmp.eq.s32.totalorder %s19, 0
      %p58 = por %p56, %p57
      %p59 = scmp.ne.s32.totalorder %s45, %s46
      %p60 = scmp.eq.s32.totalorder %s20, 1
      %p61 = por %p59, %p60
      %p63 = scmp.ne.s32.totalorder %s46, %s62
      %p64 = scmp.eq.s32.totalorder %s20, 0
      %p65 = por %p63, %p64
      %s66 = sadd.s32 %s21, %s22
      %p67 = scmp.lt.s32.totalorder %s66, 0
      %s68 = scalar_select %p67, %s66, 0
      %s69 = sadd.s32 %s33, %s29
      %p70 = scmp.lt.s32.totalorder %s69, 0
      %s71 = scalar_select %p70, %s69, 0
      %s72 = ssub.s32 %s68, %s71
      %p73 = scmp.eq.s32.totalorder %s72, 0
      %s75 = sadd.s32 %s74, 1
      %s76 = scalar_select %p73, %s74, %s75
      %p79 = pneg %p73
      %p80 = scmp.eq.s32.totalorder %s14, 1
      %p81 = por %p79, %p80
      %p82 = scmp.ne.s32.totalorder %s74, %s77
      %p83 = scmp.eq.s32.totalorder %s14, 0
      %p84 = por %p82, %p83
      %p85 = scmp.ne.s32.totalorder %s74, %s77
      %p86 = scmp.eq.s32.totalorder %s19, 1
      %p87 = por %p85, %p86
      %p88 = scmp.ne.s32.totalorder %s77, %s78
      %p89 = scmp.eq.s32.totalorder %s19, 0
      %p90 = por %p88, %p89
      %p91 = scmp.ne.s32.totalorder %s77, %s78
      %p92 = scmp.eq.s32.totalorder %s20, 1
      %p93 = por %p91, %p92
      %p95 = scmp.ne.s32.totalorder %s78, %s94
      %p96 = scmp.eq.s32.totalorder %s20, 0
      %p97 = por %p95, %p96
      %s98 = ssub.s32 %s21, %s33
      %p99 = scmp.eq.s32.totalorder %s98, 0
      %s101 = sadd.s32 %s100, 1
      %s102 = scalar_select %p99, %s100, %s101
      %p105 = pneg %p99
      %p106 = scmp.eq.s32.totalorder %s14, 1
      %p107 = por %p105, %p106
      %p108 = scmp.ne.s32.totalorder %s100, %s103
      %p109 = scmp.eq.s32.totalorder %s14, 0
      %p110 = por %p108, %p109
      %p111 = scmp.ne.s32.totalorder %s100, %s103
      %p112 = scmp.eq.s32.totalorder %s19, 1
      %p113 = por %p111, %p112
      %p114 = scmp.ne.s32.totalorder %s103, %s104
      %p115 = scmp.eq.s32.totalorder %s19, 0
      %p116 = por %p114, %p115
      %p117 = scmp.ne.s32.totalorder %s103, %s104
      %p118 = scmp.eq.s32.totalorder %s20, 1
      %p119 = por %p117, %p118
      %p121 = scmp.ne.s32.totalorder %s104, %s120
      %p122 = scmp.eq.s32.totalorder %s20, 0
      %p123 = por %p121, %p122
      %p124 = scmp.le.s32.totalorder 1, %s14
      %p125 = scmp.lt.s32.totalorder %s14, 3
      %p126 = pnand %p124, %p125
      %p127 = pneg %p126
      // Predicated region
      $region9: #{tpu_custom_call.1} parent=5 // pred_check
        _
      $region10: #{tpu_custom_call.1} parent=5 // pred_check_branch
        %129 = sbr.rel (%p126) target = $region12
      $region11: #{tpu_custom_call.1} parent=5 // pred_region
        %s130 = ssub.s32 %s14, 1
      $region12: #{tpu_custom_call.1} parent=5 // pred_fallthru
        _
      %p131 = scmp.lt.s32.totalorder %s14, 2
      // Predicated region
      $region13: #{tpu_custom_call.1} parent=5 // pred_check
        %p132 = pneg %p131
      $region14: #{tpu_custom_call.1} parent=5 // pred_check_branch
        %134 = sbr.rel (%p132) target = $region16
      $region15: #{tpu_custom_call.1} parent=5 // pred_region
        // Predicated region
        $region17: #{tpu_custom_call.1} parent=15 // pred_check
          %p135 = pneg %p52
        $region18: #{tpu_custom_call.1} parent=15 // pred_check_branch
          %137 = sbr.rel (%p135) target = $region20
        $region19: #{tpu_custom_call.1} parent=15 // pred_region
          %s138 = sand.u32 %s42, 1
          %s139 = scalar_lea.sflag [#allocation4], %s138
          %s140 = sand.u32 %s42, 1
          %s141 = smul.addr %s140, 16
          %s142 = scalar_lea.vmem [#allocation3], %s141
          %s143 = sadd.s32 %s21, %s22
          %p144 = scmp.lt.s32.totalorder %s143, 0
          %s145 = scalar_select %p144, %s143, 0
          %s146 = smul.u32 2, %s145
          %148 = vsyncadd %s139, 0
          %s149 = smul.addr %s146, 8
          %s150 = scalar_lea.hbm %s0, %s149
          %s151 = sshll.u32 %s150, 4
          %s152 = int_to_ptr.hbm [resolvable:$true] %s151
          %s153 = sshll.u32 %s142, 4
          %s154 = int_to_ptr.vmem [resolvable:$true] %s153
          %159 = dma.hbm_to_vmem [thread:$0]  %s152, 256, %s154, %s139, 128, 128, 8
        $region20: #{tpu_custom_call.1} parent=15 // pred_fallthru
          _
        // Predicated region
        $region21: #{tpu_custom_call.1} parent=15 // pred_check
          %p160 = pneg %p84
        $region22: #{tpu_custom_call.1} parent=15 // pred_check_branch
          %162 = sbr.rel (%p160) target = $region24
        $region23: #{tpu_custom_call.1} parent=15 // pred_region
          %s163 = sand.u32 %s74, 1
          %s164 = scalar_lea.sflag [#allocation6], %s163
          %s165 = sand.u32 %s74, 1
          %s166 = smul.addr %s165, 16
          %s167 = scalar_lea.vmem [#allocation5], %s166
          %s168 = sadd.s32 %s21, %s22
          %p169 = scmp.lt.s32.totalorder %s168, 0
          %s170 = scalar_select %p169, %s168, 0
          %s171 = smul.u32 2, %s170
          %173 = vsyncadd %s164, 0
          %s174 = smul.addr %s171, 8
          %s175 = scalar_lea.hbm %s1, %s174
          %s176 = sshll.u32 %s175, 4
          %s177 = int_to_ptr.hbm [resolvable:$true] %s176
          %s178 = sshll.u32 %s167, 4
          %s179 = int_to_ptr.vmem [resolvable:$true] %s178
          %184 = dma.hbm_to_vmem [thread:$0]  %s177, 256, %s179, %s164, 128, 128, 8
        $region24: #{tpu_custom_call.1} parent=15 // pred_fallthru
          _
      $region16: #{tpu_custom_call.1} parent=5 // pred_fallthru
        _
      %p185 = scmp.le.s32.totalorder 1, %s14
      %p186 = scmp.lt.s32.totalorder %s14, 3
      %p187 = pnand %p185, %p186
      %p188 = pneg %p187
      // Predicated region
      $region25: #{tpu_custom_call.1} parent=5 // pred_check
        _
      $region26: #{tpu_custom_call.1} parent=5 // pred_check_branch
        %190 = sbr.rel (%p187) target = $region28
      $region27: #{tpu_custom_call.1} parent=5 // pred_region
        %s191 = ssub.s32 %s14, 1
        %s192 = sand.u32 %s45, 1
        %s193 = scalar_lea.sflag [#allocation4], %s192
        %s194 = sand.u32 %s45, 1
        %s195 = smul.addr %s194, 16
        %s196 = scalar_lea.vmem [#allocation3], %s195
        // Predicated region
        $region29: #{tpu_custom_call.1} parent=27 // pred_check
          %p197 = pneg %p58
        $region30: #{tpu_custom_call.1} parent=27 // pred_check_branch
          %199 = sbr.rel (%p197) target = $region32
        $region31: #{tpu_custom_call.1} parent=27 // pred_region
          %201 = dma.done %s193, 256
        $region32: #{tpu_custom_call.1} parent=27 // pred_fallthru
          _
        %s202 = sand.u32 %s77, 1
        %s203 = scalar_lea.sflag [#allocation6], %s202
        %s204 = sand.u32 %s77, 1
        %s205 = smul.addr %s204, 16
        %s206 = scalar_lea.vmem [#allocation5], %s205
        // Predicated region
        $region33: #{tpu_custom_call.1} parent=27 // pred_check
          %p207 = pneg %p90
        $region34: #{tpu_custom_call.1} parent=27 // pred_check_branch
          %209 = sbr.rel (%p207) target = $region36
        $region35: #{tpu_custom_call.1} parent=27 // pred_region
          %211 = dma.done %s203, 256
        $region36: #{tpu_custom_call.1} parent=27 // pred_fallthru
          _
        %s212 = sand.u32 %s45, 1
        %s213 = scalar_lea.sflag [#allocation4], %s212
        %s214 = sand.u32 %s45, 1
        %s215 = smul.addr %s214, 16
        %s216 = scalar_lea.vmem [#allocation3], %s215
        %p217 = pneg %p58
        %p218 = pneg %p55
        %s219 = sand.u32 %s77, 1
        %s220 = scalar_lea.sflag [#allocation6], %s219
        %s221 = sand.u32 %s77, 1
        %s222 = smul.addr %s221, 16
        %s223 = scalar_lea.vmem [#allocation5], %s222
        %p224 = pneg %p90
        %p225 = pneg %p87
        %p226 = pneg %p116
        %p227 = pneg %p113
        %p228 = scmp.lt.s32.totalorder %s23, 1
        %s229 = scalar_select %p228, %s23, 1
        %s230 = scalar_lea.vmem %s2, %s229
        %s231 = sadd.s32 %s23, %s24
        %p232 = scmp.lt.s32.totalorder %s231, 0
        %s233 = scalar_select %p232, %s231, 0
        %s234 = smul.u32 2, %s233
        %s235 = sadd.s32 %s23, %s24
        %p236 = scmp.lt.s32.totalorder %s235, 0
        %s237 = scalar_select %p236, %s235, 0
        %s238 = smul.u32 2, %s237
        %p239 = scmp.lt.s32.totalorder %s23, 1
        %s240 = scalar_select %p239, %s23, 1
        %s241 = scalar_lea.vmem %s2, %s240
        %p242 = scmp.eq.s32.totalorder %s24, 0
        // Predicated region
        $region37: #{tpu_custom_call.1} parent=27 // pred_check
          %p243 = pneg %p242
        $region38: #{tpu_custom_call.1} parent=27 // pred_check_branch
          %245 = sbr.rel (%p243) target = $region40
        $region39: #{tpu_custom_call.1} parent=27 // pred_region
          %246 = vst [vmem:[#allocation2] sm:$0xff] 0.0
          %247 = vst [vmem:[#allocation2 + $0x8] sm:$0xff] 0.0
        $region40: #{tpu_custom_call.1} parent=27 // pred_fallthru
          _
        %s248 = sadd.s32 %s23, %s24
        %s249 = smul.u32 %s248, 2048
        %v250 = vlaneseq
        %v251 = vshrl.u32 %v250, 7
        %v252 = vadd.s32 %v251, 8
        %v253 = vlaneseq
        %v254 = vand.u32 %v253, 127
        %v255 = vmul.u32 %v251, 128
        %v256 = vmul.u32 %v252, 128
        %v257 = vstv %s249
        %v258 = vadd.s32 %v257, %v255
        %v259 = vadd.s32 %v257, %v256
        %v260 = vadd.s32 %v258, %v254
        %v261 = vadd.s32 %v259, %v254
        %vm262 = vcmp.lt.s32.totalorder %v260, 2048
        %vm263 = vcmp.lt.s32.totalorder %v261, 2048
        %v264 = vld [vmem:[%s196] sm:$0xff]
        %v265 = vld [vmem:[%s196 + $0x8] sm:$0xff]
        %v266 = vld [vmem:[%s206] sm:$0xff]
        %v267 = vld [vmem:[%s206 + $0x8] sm:$0xff]
        %v268 = vsub.f32 %v266, %v264
        %v269 = vsub.f32 %v267, %v265
        %v270 = vmul.f32 %v268, -2.0
        %v271 = vmul.f32 %v269, -2.0
        %v272 = vmax.f32 %v270, 0.0
        %v273 = vmax.f32 %v271, 0.0
        %v274 = vand.u32 2147483647, %v270
        %v275 = vand.u32 2147483647, %v271
        %v276 = vsub.f32 0.0, %v274
        %v277 = vsub.f32 0.0, %v275
        %v278 = vmul.f32 %v276, 1.442695
        %v279 = vpow.pop %v278
        %v280 = vmul.f32 %v277, 1.442695
        %v281 = vpow.pop %v280
        %v282 = vadd.f32 %v279, 1.0
        %v283 = vlog2.pop %v282
        %v284 = vmul.f32 %v283, 0.6931472
        %v285 = vmul.f32 -0.5, %v279
        %v286 = vadd.f32 %v285, 1.0
        %v287 = vmul.f32 %v286, %v279
        %v288 = vand.u32 2147483647, %v279
        %vm289 = vcmp.lt.f32.partialorder %v288, 0.0004427343
        %v290 = vsel %vm289, %v287, %v284
        %v291 = vadd.f32 %v281, 1.0
        %v292 = vlog2.pop %v291
        %v293 = vmul.f32 %v292, 0.6931472
        %v294 = vmul.f32 -0.5, %v281
        %v295 = vadd.f32 %v294, 1.0
        %v296 = vmul.f32 %v295, %v281
        %v297 = vand.u32 2147483647, %v281
        %vm298 = vcmp.lt.f32.partialorder %v297, 0.0004427343
        %v299 = vsel %vm298, %v296, %v293
        %v300 = vadd.f32 %v272, %v290
        %v301 = vadd.f32 %v273, %v299
        %v302 = vadd.f32 %v268, %v300
        %v303 = vadd.f32 %v269, %v301
        %v304 = vsub.f32 %v302, 0.6931472
        %v305 = vsub.f32 %v303, 0.6931472
        %v306 = vld [vmem:[#allocation2] sm:$0xff]
        %v307 = vld [vmem:[#allocation2 + $0x8] sm:$0xff]
        %v308 = vsel %vm262, %v304, 0.0
        %v309 = vsel %vm263, %v305, 0.0
        %v310 = vadd.f32 %v306, %v308
        %v311 = vadd.f32 %v307, %v309
        %312 = vst [vmem:[#allocation2] sm:$0xff] %v310
        %313 = vst [vmem:[#allocation2 + $0x8] sm:$0xff] %v311
        // Predicated region
        $region41: #{tpu_custom_call.1} parent=27 // pred_check
          %p314 = pneg %p242
        $region42: #{tpu_custom_call.1} parent=27 // pred_check_branch
          %316 = sbr.rel (%p314) target = $region44
        $region43: #{tpu_custom_call.1} parent=27 // pred_region
          %v317 = vld [vmem:[#allocation2] sm:$0xff]
          %v318 = vld [vmem:[#allocation2 + $0x8] sm:$0xff]
          %v319 = vadd.f32 %v317, %v318
          %320 = vadd.xlane.f32.xlu0 %v319
          %v321 = vpop.xlane.xlu0 %320
          %v322 = vrot.slane %v321, 4
          %v323 = vadd.f32 %v321, %v322
          %v324 = vrot.slane %v323, 2
          %v325 = vadd.f32 %v323, %v324
          %v326 = vrot.slane %v325, 1
          %v327 = vadd.f32 %v325, %v326
          %s328 = vtos %v327
          %v329 = vstv %s328
          %vm330 = vcmask 0
          %331 = vst.msk [vmem:[%s241] sm:$0x1] %vm330, %v329
        $region44: #{tpu_custom_call.1} parent=27 // pred_fallthru
          _
        %p332 = scmp.lt.s32.totalorder %s23, 1
        %s333 = scalar_select %p332, %s23, 1
        %s334 = scalar_lea.vmem %s2, %s333
        // Predicated region
        $region45: #{tpu_custom_call.1} parent=27 // pred_check
          %p335 = pneg %p113
        $region46: #{tpu_custom_call.1} parent=27 // pred_check_branch
          %337 = sbr.rel (%p335) target = $region48
        $region47: #{tpu_custom_call.1} parent=27 // pred_region
          _
        $region48: #{tpu_custom_call.1} parent=27 // pred_fallthru
          _
      $region28: #{tpu_custom_call.1} parent=5 // pred_fallthru
        _
      %p338 = scmp.le.s32.totalorder 2, %s14
      // Predicated region
      $region49: #{tpu_custom_call.1} parent=5 // pred_check
        %p339 = pneg %p338
      $region50: #{tpu_custom_call.1} parent=5 // pred_check_branch
        %341 = sbr.rel (%p339) target = $region52
      $region51: #{tpu_custom_call.1} parent=5 // pred_region
        %s342 = ssub.s32 %s14, 2
        // Predicated region
        $region53: #{tpu_custom_call.1} parent=51 // pred_check
          %p343 = pneg %p119
        $region54: #{tpu_custom_call.1} parent=51 // pred_check_branch
          %345 = sbr.rel (%p343) target = $region56
        $region55: #{tpu_custom_call.1} parent=51 // pred_region
          %p346 = scmp.lt.s32.totalorder %s25, 1
          %s347 = scalar_select %p346, %s25, 1
          %s348 = scalar_lea.vmem %s2, %s347
        $region56: #{tpu_custom_call.1} parent=51 // pred_fallthru
          _
      $region52: #{tpu_custom_call.1} parent=5 // pred_fallthru
        _
    $region6: #{tpu_custom_call.1} parent=1 // loop_footer
      %s18 = sadd.s32 1, %s14
    $region7: #{tpu_custom_call.1} parent=1 // loop_footer_branch
      %13 = sbr.rel target = $region3
    $region8: #{tpu_custom_call.1} parent=1 // loop_exit
      _
    %349 = vsyncpa [#allocation4], 1
    %s350 = scalar_lea.sflag [#allocation4], 1
    %351 = vsyncpa %s350, 1
    %352 = vsyncpa [#allocation6], 1
    %s353 = scalar_lea.sflag [#allocation6], 1
    %354 = vsyncpa %s353, 1

</llo_original>
